<compile_context>
chip_gen: v5e
topology: v5e:2x2
jax: 0.10.0
libtpu: 0.0.40
codegen_flags: <defaults>
</compile_context>

<pallas_src>
import functools

import jax
import jax.numpy as jnp
from jax.experimental import pallas as pl
from jax.experimental.pallas import tpu as pltpu

_INV_SQRT2 = 0.7071067811865476       # 1/sqrt(2), exact erf GELU (nn.GELU default)
_SQRT_2_OVER_PI = 0.7978845608028654  # for optional tanh-approx GELU


def _mlp_kernel(x_ref, w1_ref, b1_ref, w2_ref, b2_ref, o_ref, *scratch,
                approx_gelu=False):
    """One (tm, D) token tile x one (th) hidden chunk; accumulates over H chunks."""
    j = pl.program_id(1)
    acc_is_out = not scratch            # f32 output: accumulate in o_ref directly
    acc_ref = o_ref if acc_is_out else scratch[0]

    @pl.when(j == 0)
    def _init():
        acc_ref[...] = jnp.zeros_like(acc_ref)

    # c_fc chunk: (tm, D) @ (D, th) — bf16 operands on the MXU, f32 accumulation.
    h = jnp.dot(x_ref[...], w1_ref[...],
                preferred_element_type=jnp.float32) + b1_ref[...]

    if approx_gelu:
        # tanh-approx GELU (tanh runs on the EUP slot); opt-in only.
        g = 0.5 * h * (1.0 + jnp.tanh(_SQRT_2_OVER_PI * (h + 0.044715 * h * h * h)))
    else:
        # Exact erf GELU in f32 — matches PyTorch nn.GELU() default.
        g = 0.5 * h * (1.0 + jax.scipy.special.erf(h * _INV_SQRT2))

    # c_proj chunk: (tm, th) @ (th, D), accumulated (MRB-friendly `+= dot` form).
    acc_ref[...] += jnp.dot(g.astype(jnp.bfloat16), w2_ref[...],
                            preferred_element_type=jnp.float32)

    @pl.when(j == pl.num_programs(1) - 1)
    def _finalize():
        if acc_is_out:
            o_ref[...] += b2_ref[...]
        else:
            o_ref[...] = (acc_ref[...] + b2_ref[...]).astype(o_ref.dtype)


def _round_up(a, b):
    return ((a + b - 1) // b) * b


def _choose_tm(M, tm_cap):
    """M tile: multiple of 8, <= tm_cap, minimal (ideally zero) wrapper padding."""
    M8 = _round_up(M, 8)
    if M8 <= tm_cap:
        return M8, M8
    # Largest multiple-of-8 divisor of M8 that is <= tm_cap (pad <= 7 rows total).
    best = 8
    d = (tm_cap // 8) * 8
    while d >= 8:
        if M8 % d == 0:
            best = d
            break
        d -= 8
    if best >= max(tm_cap // 4, 8):
        return best, M8
    # Ragged M with only tiny divisors: fall back to padding to a full tile.
    tm_eff = (tm_cap // 8) * 8
    return tm_eff, _round_up(M, tm_eff)


def _th_candidates(H, th_cap):
    """Lane-aligned H chunks: multiples of 128 dividing H; else the full H."""
    divs = [d for d in range(128, H + 1, 128) if H % d == 0]
    if not divs:
        return [H]
    cands = [d for d in divs if d <= th_cap] or [divs[0]]
    return sorted(cands, reverse=True)


def _vmem_bytes(tm, th, D, out_itemsize, with_scratch):
    """Double-buffered pipeline blocks + (optional) f32 accumulator scratch."""
    bf16, f32 = 2, 4
    blocks = (tm * D * bf16        # x tile
              + D * th * bf16      # w1 chunk
              + th * f32           # b1 chunk
              + th * D * bf16      # w2 chunk
              + D * f32            # b2
              + tm * D * out_itemsize)  # out tile
    total = 2 * blocks
    if with_scratch:
        total += tm * D * f32
    return total


@functools.partial(jax.jit, static_argnames=("tm", "th", "approx_gelu"))
def mlp_pallas(x, w1, b1, w2, b2, *, tm=512, th=1024, approx_gelu=False):
    """Fused GPT-2 MLP: GELU(x @ w1 + b1) @ w2 + b2.

    x: (M, D); w1: (D, H); b1: (H,) or (1, H); w2: (H, D); b2: (D,) or (1, D).
    """
    M, D = x.shape
    H = w1.shape[1]
    out_dtype = x.dtype
    out_itemsize = jnp.dtype(out_dtype).itemsize

    # Stream operands in bf16 (halves HBM traffic, no per-step in-kernel casts).
    # In production, keep the params stored in bf16 to avoid the one-time cast.
    x_bf = x.astype(jnp.bfloat16)
    w1_bf = w1.astype(jnp.bfloat16)
    w2_bf = w2.astype(jnp.bfloat16)
    b1_f = b1.reshape(1, H).astype(jnp.float32)
    b2_f = b2.reshape(1, D).astype(jnp.float32)

    # f32 outputs accumulate directly in the resident output block (no scratch).
    acc_in_out = out_dtype == jnp.float32

    # ---- tile selection, re-derived against this generation's VMEM ----------
    tm_eff, M_pad = _choose_tm(M, tm)
    th_list = _th_candidates(H, th)
    ti = 0
    th_eff = th_list[ti]

    try:
        vmem_cap = int(pltpu.get_tpu_info().vmem_capacity_bytes)
    except Exception:
        vmem_cap = 64 * 1024 * 1024   # conservative fallback = v7x per-core VMEM
    target = int(0.70 * vmem_cap)

    while _vmem_bytes(tm_eff, th_eff, D, out_itemsize, not acc_in_out) > target:
        if ti + 1 < len(th_list):
            ti += 1
            th_eff = th_list[ti]
        elif tm_eff >= 16 and tm_eff % 16 == 0:
            tm_eff //= 2
        else:
            break

    if M_pad != M:
        x_bf = jnp.pad(x_bf, ((0, M_pad - M), (0, 0)))  # zero rows, sliced off below

    grid = (M_pad // tm_eff, H // th_eff)   # reduction (H chunks) axis last
    num_m_tiles = grid[0]
    # TODO(synk): on v7x (2 TCs), when num_m_tiles == 1 add a second 'parallel'
    # grid axis over output-D chunks so both cores get work for small-M calls.

    budget = _vmem_bytes(tm_eff, th_eff, D, out_itemsize, not acc_in_out)
    vmem_limit = int(min(max(int(budget * 1.25) + (1 << 20), 32 << 20),
                         int(0.92 * vmem_cap)))

    cost = pl.CostEstimate(
        flops=4 * M_pad * D * H,            # two matmuls, 2*M*D*H flops each
        transcendentals=M_pad * H,          # erf / tanh
        bytes_accessed=int(
            M_pad * D * 2                   # x (bf16), read once
            + num_m_tiles * 2 * D * H * 2   # w1 + w2 re-streamed per M tile (bf16)
            + num_m_tiles * (H + D) * 4     # biases per M tile (f32)
            + M_pad * D * out_itemsize      # output write
        ),
    )

    scratch = [] if acc_in_out else [pltpu.VMEM((tm_eff, D), jnp.float32)]
    kernel = functools.partial(_mlp_kernel, approx_gelu=approx_gelu)

    out = pl.pallas_call(
        kernel,
        out_shape=jax.ShapeDtypeStruct((M_pad, D), out_dtype),
        grid_spec=pltpu.PrefetchScalarGridSpec(
            num_scalar_prefetch=0,
            grid=grid,
            in_specs=[
                pl.BlockSpec((tm_eff, D), lambda i, j: (i, 0)),   # x tile (resident over H)
                pl.BlockSpec((D, th_eff), lambda i, j: (0, j)),   # w1 H-chunk (streams)
                pl.BlockSpec((1, th_eff), lambda i, j: (0, j)),   # b1 H-chunk
                pl.BlockSpec((th_eff, D), lambda i, j: (j, 0)),   # w2 H-chunk (streams)
                pl.BlockSpec((1, D), lambda i, j: (0, 0)),        # b2 (resident)
            ],
            out_specs=pl.BlockSpec((tm_eff, D), lambda i, j: (i, 0)),
            scratch_shapes=scratch,
        ),
        compiler_params=pltpu.CompilerParams(
            dimension_semantics=("parallel", "arbitrary"),
            vmem_limit_bytes=vmem_limit,
        ),
        cost_estimate=cost,
    )(x_bf, w1_bf, b1_f, w2_bf, b2_f)

    if M_pad != M:
        out = out[:M]
    return out


def mlp_reference(x, w1, b1, w2, b2):
    h = x @ w1 + b1
    g = jax.nn.gelu(h, approximate=False)
    return g @ w2 + b2


if __name__ == "__main__":
    # Small GPT-2-style config: batch=2, seq=8, n_embd=32 -> hidden=128.
    B, T, n_embd = 2, 8, 32
    hidden = 4 * n_embd

    key = jax.random.PRNGKey(0)
    kx, k1, k2, k3, k4 = jax.random.split(key, 5)

    x = jax.random.normal(kx, (B, T, n_embd), dtype=jnp.float32)
    # Deterministic synthetic params (nn.Linear weights, stored (in, out)).
    w1 = jax.random.normal(k1, (n_embd, hidden), dtype=jnp.float32) * 0.02
    b1 = jax.random.normal(k2, (hidden,), dtype=jnp.float32) * 0.02
    w2 = jax.random.normal(k3, (hidden, n_embd), dtype=jnp.float32) * 0.02
    b2 = jax.random.normal(k4, (n_embd,), dtype=jnp.float32) * 0.02

    x2d = x.reshape(B * T, n_embd)
    out = mlp_pallas(x2d, w1, b1, w2, b2)
    out = jax.block_until_ready(out)

    ref = mlp_reference(x2d, w1, b1, w2, b2)
    assert out.shape == (B * T, n_embd)
    # bf16 matmul operands (f32 accumulation) vs. a pure-f32 reference:
    # tolerance loosened accordingly.
    assert jnp.allclose(out, ref, atol=1e-2, rtol=1e-2), "mismatch vs reference"

    # Reshape back to (B, T, n_embd) to match the module's output layout.
    out3d = out.reshape(B, T, n_embd)
    assert out3d.shape == (B, T, n_embd)

    print("KERNEL_OK")
</pallas_src>

<mosaic_0001>
module attributes {stable_mosaic.version = 11 : i64} {
  func.func @_mlp_kernel(%arg0: i32, %arg1: i32, %arg2: memref<16x32xbf16, #tpu.memory_space<vmem>>, %arg3: memref<32x128xbf16, #tpu.memory_space<vmem>>, %arg4: memref<1x128xf32, #tpu.memory_space<vmem>>, %arg5: memref<128x32xbf16, #tpu.memory_space<vmem>>, %arg6: memref<1x32xf32, #tpu.memory_space<vmem>>, %arg7: memref<16x32xf32, #tpu.memory_space<vmem>>) attributes {dimension_semantics = [#tpu.dimension_semantics<parallel>, #tpu.dimension_semantics<arbitrary>], iteration_bounds = array<i64: 1, 1>, scalar_prefetch = 0 : i64, scratch_operands = 0 : i64, tpu.core_type = #tpu.core_type<tc>, window_params = [{transform_indices = @transform_0, window_bounds = array<i64: 16, 32>}, {transform_indices = @transform_1, window_bounds = array<i64: 32, 128>}, {transform_indices = @transform_2, window_bounds = array<i64: 1, 128>}, {transform_indices = @transform_3, window_bounds = array<i64: 128, 32>}, {pipeline_mode = #tpu.pipeline_mode<synchronous>, transform_indices = @transform_4, window_bounds = array<i64: 1, 32>}, {transform_indices = @transform_5, window_bounds = array<i64: 16, 32>}]} {
    %c0_i32 = arith.constant 0 : i32
    %0 = arith.cmpi eq, %arg1, %c0_i32 : i32
    %1 = arith.extui %0 : i1 to i32
    %c0_i32_0 = arith.constant 0 : i32
    %2 = arith.cmpi ne, %1, %c0_i32_0 : i32
    scf.if %2 {
      %cst_18 = arith.constant 0.000000e+00 : f32
      %26 = vector.broadcast %cst_18 : f32 to vector<16x32xf32>
      %c0_19 = arith.constant 0 : index
      %c0_20 = arith.constant 0 : index
      %27 = vector.load %arg7[%c0_19, %c0_20] : memref<16x32xf32, #tpu.memory_space<vmem>>, vector<16x32xf32>
      tpu.vector_store %arg7[%c0_19, %c0_20], %26 {strides = array<i32>} : memref<16x32xf32, #tpu.memory_space<vmem>>, vector<16x32xf32>,
    } else {
    }
    %c0 = arith.constant 0 : index
    %c0_1 = arith.constant 0 : index
    %3 = vector.load %arg2[%c0, %c0_1] : memref<16x32xbf16, #tpu.memory_space<vmem>>, vector<16x32xbf16>
    %c0_2 = arith.constant 0 : index
    %c0_3 = arith.constant 0 : index
    %4 = vector.load %arg3[%c0_2, %c0_3] : memref<32x128xbf16, #tpu.memory_space<vmem>>, vector<32x128xbf16>
    %cst = arith.constant dense<0.000000e+00> : vector<16x128xf32>
    %5 = tpu.matmul %3, %4, %cst {dimension_numbers = #tpu.dot_dimension_numbers<[1], [0], [0], [1], [0, 0, 1, 1], [], []>} : vector<16x32xbf16>, vector<32x128xbf16>, vector<16x128xf32> -> vector<16x128xf32>
    %c0_4 = arith.constant 0 : index
    %c0_5 = arith.constant 0 : index
    %6 = vector.load %arg4[%c0_4, %c0_5] : memref<1x128xf32, #tpu.memory_space<vmem>>, vector<1x128xf32>
    %7 = vector.broadcast %6 : vector<1x128xf32> to vector<16x128xf32>
    %8 = arith.addf %5, %7 : vector<16x128xf32>
    %cst_6 = arith.constant 5.000000e-01 : f32
    %9 = vector.broadcast %cst_6 : f32 to vector<16x128xf32>
    %10 = arith.mulf %9, %8 : vector<16x128xf32>
    %cst_7 = arith.constant 0.707106769 : f32
    %11 = vector.broadcast %cst_7 : f32 to vector<16x128xf32>
    %12 = arith.mulf %8, %11 : vector<16x128xf32>
    %13 = math.erf %12 : vector<16x128xf32>
    %cst_8 = arith.constant 1.000000e+00 : f32
    %14 = vector.broadcast %cst_8 : f32 to vector<16x128xf32>
    %15 = arith.addf %14, %13 : vector<16x128xf32>
    %16 = arith.mulf %10, %15 : vector<16x128xf32>
    %c0_9 = arith.constant 0 : index
    %c0_10 = arith.constant 0 : index
    %17 = vector.load %arg7[%c0_9, %c0_10] : memref<16x32xf32, #tpu.memory_space<vmem>>, vector<16x32xf32>
    %18 = arith.truncf %16 : vector<16x128xf32> to vector<16x128xbf16>
    %c0_11 = arith.constant 0 : index
    %c0_12 = arith.constant 0 : index
    %19 = vector.load %arg5[%c0_11, %c0_12] : memref<128x32xbf16, #tpu.memory_space<vmem>>, vector<128x32xbf16>
    %cst_13 = arith.constant dense<0.000000e+00> : vector<16x32xf32>
    %20 = tpu.matmul %18, %19, %cst_13 {dimension_numbers = #tpu.dot_dimension_numbers<[1], [0], [0], [1], [0, 0, 1, 1], [], []>} : vector<16x128xbf16>, vector<128x32xbf16>, vector<16x32xf32> -> vector<16x32xf32>
    %21 = arith.addf %17, %20 : vector<16x32xf32>
    %c0_14 = arith.constant 0 : index
    %c0_15 = arith.constant 0 : index
    %22 = vector.load %arg7[%c0_14, %c0_15] : memref<16x32xf32, #tpu.memory_space<vmem>>, vector<16x32xf32>
    tpu.vector_store %arg7[%c0_14, %c0_15], %21 {strides = array<i32>} : memref<16x32xf32, #tpu.memory_space<vmem>>, vector<16x32xf32>,
    %c0_i32_16 = arith.constant 0 : i32
    %23 = arith.cmpi eq, %arg1, %c0_i32_16 : i32
    %24 = arith.extui %23 : i1 to i32
    %c0_i32_17 = arith.constant 0 : i32
    %25 = arith.cmpi ne, %24, %c0_i32_17 : i32
    scf.if %25 {
      %c0_18 = arith.constant 0 : index
      %c0_19 = arith.constant 0 : index
      %26 = vector.load %arg7[%c0_18, %c0_19] : memref<16x32xf32, #tpu.memory_space<vmem>>, vector<16x32xf32>
      %c0_20 = arith.constant 0 : index
      %c0_21 = arith.constant 0 : index
      %27 = vector.load %arg6[%c0_20, %c0_21] : memref<1x32xf32, #tpu.memory_space<vmem>>, vector<1x32xf32>
      %28 = vector.broadcast %27 : vector<1x32xf32> to vector<16x32xf32>
      %29 = arith.addf %26, %28 : vector<16x32xf32>
      %c0_22 = arith.constant 0 : index
      %c0_23 = arith.constant 0 : index
      %30 = vector.load %arg7[%c0_22, %c0_23] : memref<16x32xf32, #tpu.memory_space<vmem>>, vector<16x32xf32>
      tpu.vector_store %arg7[%c0_22, %c0_23], %29 {strides = array<i32>} : memref<16x32xf32, #tpu.memory_space<vmem>>, vector<16x32xf32>,
    } else {
    }
    return
  }
  func.func @transform_0(%arg0: i32, %arg1: i32) -> (i32, i32) {
    %c0_i32 = arith.constant 0 : i32
    %c0_i32_0 = arith.constant 0 : i32
    return %arg0, %c0_i32 : i32, i32
  }
  func.func @transform_1(%arg0: i32, %arg1: i32) -> (i32, i32) {
    %c0_i32 = arith.constant 0 : i32
    %c0_i32_0 = arith.constant 0 : i32
    return %c0_i32, %arg1 : i32, i32
  }
  func.func @transform_2(%arg0: i32, %arg1: i32) -> (i32, i32) {
    %c0_i32 = arith.constant 0 : i32
    %c0_i32_0 = arith.constant 0 : i32
    return %c0_i32, %arg1 : i32, i32
  }
  func.func @transform_3(%arg0: i32, %arg1: i32) -> (i32, i32) {
    %c0_i32 = arith.constant 0 : i32
    %c0_i32_0 = arith.constant 0 : i32
    return %arg1, %c0_i32 : i32, i32
  }
  func.func @transform_4(%arg0: i32, %arg1: i32) -> (i32, i32) {
    %c0_i32 = arith.constant 0 : i32
    %c0_i32_0 = arith.constant 0 : i32
    %c0_i32_1 = arith.constant 0 : i32
    return %c0_i32, %c0_i32_0 : i32, i32
  }
  func.func @transform_5(%arg0: i32, %arg1: i32) -> (i32, i32) {
    %c0_i32 = arith.constant 0 : i32
    %c0_i32_0 = arith.constant 0 : i32
    return %arg0, %c0_i32 : i32, i32
  }
}

</mosaic_0001>

<llo_original>
// kernel: mlp_pallas.1
$region0: #{mlp_pallas.1}
  #allocation0 [shape = 'u32[]', space=smem, size = 0x4, offset = 0x4, fixed_abs, tag = 'smem constant byte address 0x4 - core index']
  #allocation1 [shape = 'u32[72,128]{1,0:T(1,128)}', space=vmem, size = 0x9000, scoped, tag = 'internal scratch']
  %s0 = inlined_call_operand.vmem [shape: bf16[16,32], index: 0, kind: input, shape index: {}]
  %s1 = inlined_call_operand.vmem [shape: bf16[32,128], index: 1, kind: input, shape index: {}]
  %s2 = inlined_call_operand.vmem [shape: f32[1,128], index: 2, kind: input, shape index: {}]
  %s3 = inlined_call_operand.vmem [shape: bf16[128,32], index: 3, kind: input, shape index: {}]
  %s4 = inlined_call_operand.vmem [shape: f32[1,32], index: 4, kind: input, shape index: {}]
  %s5 = inlined_call_operand.hbm [shape: f32[16,32], index: 5, kind: output, shape index: {}]
  %s6 = sld [smem:[#allocation0]]
  $region38: #{mlp_pallas.1} parent=0
    _
  %s8 = ssub.s32 1, %s6
  %s9 = scalar_select 0, %s8, %s6
  $region1: #{mlp_pallas.1} parent=0
    #allocation2 [shape = 'u8[8192]{0}', space=vmem, size = 0x2000, scoped, tag = 'output window, operand 0, single buffered']
    #allocation3 [shape = 's32[1]{0}', space=sflag, size = 0x4, scoped, tag = 'scoped memory for mlp_pallas.1']
    %10 = vsyncpa [#allocation3], 0
    // Predicated region
    $region2: #{mlp_pallas.1} parent=1 // pred_check
      _
    $region3: #{mlp_pallas.1} parent=1 // pred_check_branch
      %12 = sbr.rel (0) target = $region5
    $region4: #{mlp_pallas.1} parent=1 // pred_region
      _
    $region5: #{mlp_pallas.1} parent=1 // pred_fallthru
      _
    // Predicated region
    $region6: #{mlp_pallas.1} parent=1 // pred_check
      _
    $region7: #{mlp_pallas.1} parent=1 // pred_check_branch
      %14 = sbr.rel (0) target = $region9
    $region8: #{mlp_pallas.1} parent=1 // pred_region
      _
    $region9: #{mlp_pallas.1} parent=1 // pred_fallthru
      _
    // Predicated region
    $region10: #{mlp_pallas.1} parent=1 // pred_check
      _
    $region11: #{mlp_pallas.1} parent=1 // pred_check_branch
      %16 = sbr.rel (0) target = $region13
    $region12: #{mlp_pallas.1} parent=1 // pred_region
      _
    $region13: #{mlp_pallas.1} parent=1 // pred_fallthru
      _
    // Predicated region
    $region14: #{mlp_pallas.1} parent=1 // pred_check
      _
    $region15: #{mlp_pallas.1} parent=1 // pred_check_branch
      %18 = sbr.rel (0) target = $region17
    $region16: #{mlp_pallas.1} parent=1 // pred_region
      _
    $region17: #{mlp_pallas.1} parent=1 // pred_fallthru
      _
    // Predicated region
    $region18: #{mlp_pallas.1} parent=1 // pred_check
      _
    $region19: #{mlp_pallas.1} parent=1 // pred_check_branch
      %20 = sbr.rel (0) target = $region21
    $region20: #{mlp_pallas.1} parent=1 // pred_region
      _
    $region21: #{mlp_pallas.1} parent=1 // pred_fallthru
      _
    %p22 = scmp.eq.s32.totalorder 0, 0
    // Predicated region
    $region22: #{mlp_pallas.1} parent=1 // pred_check
      %p23 = pneg %p22
    $region23: #{mlp_pallas.1} parent=1 // pred_check_branch
      %25 = sbr.rel (%p23) target = $region25
    $region24: #{mlp_pallas.1} parent=1 // pred_region
      %vm26 = vcmask 261120
      %27 = vst.msk [vmem:[#allocation2] sm:$0xff] %vm26, 0.0
      %28 = vst.msk [vmem:[#allocation2 + $0x8] sm:$0xff] %vm26, 0.0
    $region25: #{mlp_pallas.1} parent=1 // pred_fallthru
      _
    %v29 = vld [vmem:[%s0] sm:$0xf]
    %v30 = vld [vmem:[%s0 + $0x4] sm:$0xf]
    %v31 = vld [vmem:[%s1] sm:$0xf]
    %v32 = vld [vmem:[%s1 + $0x4] sm:$0xf]
    %v33 = vld [vmem:[%s1 + $0x8] sm:$0xf]
    %v34 = vld [vmem:[%s1 + $0xc] sm:$0xf]
    %v35 = vld [vmem:[%s2] sm:$0x1]
    %v37 = vperm.slane %v35, 0
    %v41 = vunpack.c.l.b16 %v29
    %v42 = vunpack.c.l.b16 %v30
    %v43 = vpack.c.b16 %v42, %v41
    %v48 = vunpack.c.l.b16 %v31
    %v49 = vunpack.c.l.b16 %v32
    %v50 = vunpack.c.l.b16 %v33
    %v51 = vunpack.c.l.b16 %v34
    %v52 = vpack.c.b16 %v49, %v48
    %v53 = vpack.c.b16 %v51, %v50
    %vm56 = vcmask 261120
    %v58 = vsel %vm56, %v43, 0
    %60 = vmatpush.bf16.msra.mxu0 0
    %61 = vmatpush.bf16.msra.mxu0 0
    %62 = vmatpush.bf16.msra.mxu0 0
    %63 = vmatpush.bf16.msra.mxu0 0
    %64 = vmatpush.bf16.msra.mxu0 0
    %65 = vmatpush.bf16.msra.mxu0 0
    %66 = vmatpush.bf16.msra.mxu0 %v53
    %67 = vmatpush.bf16.msra.mxu0 %v52
    %68 = vmatmul.bf16.gmra.mxu0 %v58
    %v69 = vpop.f32.mrf.mxu0
    %v70 = vadd.f32 %v37, %v69
    %v71 = vpop.f32.mrf.mxu0
    %v72 = vadd.f32 %v37, %v71
    %73 = vdwg.mxu0
    %v74 = vmul.f32 %v70, 0.5
    %v75 = vmul.f32 %v72, 0.5
    %v76 = vmul.f32 %v70, 0.70710677
    %v77 = vmul.f32 %v72, 0.70710677
    %v78 = vmul.f32 %v76, %v76
    %v79 = vmin.f32 16.0, %v78
    %v80 = vmul.f32 %v79, 2.1237322e-06
    %v81 = vadd.f32 %v80, 0.00028619796
    %v82 = vmul.f32 %v79, %v81
    %v83 = vadd.f32 %v82, 0.0036580483
    %v84 = vmul.f32 %v79, %v83
    %v85 = vadd.f32 %v84, 0.05243302
    %v86 = vmul.f32 %v79, %v85
    %v87 = vadd.f32 %v86, 0.18741608
    %v88 = vmul.f32 %v79, %v87
    %v89 = vadd.f32 %v88, 1.1283791
    %v90 = vmul.f32 %v76, %v89
    %v91 = vmul.f32 %v79, 3.8918573e-05
    %v92 = vadd.f32 %v91, 0.001143296
    %v93 = vmul.f32 %v79, %v92
    %v94 = vadd.f32 %v93, 0.014752088
    %v95 = vmul.f32 %v79, %v94
    %v96 = vadd.f32 %v95, 0.112945676
    %v97 = vmul.f32 %v79, %v96
    %v98 = vadd.f32 %v97, 0.4994258
    %v99 = vmul.f32 %v79, %v98
    %v100 = vadd.f32 %v99, 1.0
    %v101 = vrcp.pop %v100
    %v102 = vmul.f32 %v100, %v101
    %v103 = vsub.f32 1.0, %v102
    %v104 = vmul.f32 %v101, %v103
    %v105 = vadd.f32 %v101, %v104
    %vm106 = vweird.f32 %v100
    %vm107 = vweird.f32 %v101
    %vm108 = vmor %vm106, %vm107
    %v109 = vsel %vm108, %v101, %v105
    %v110 = vand.u32 2147483647, %v100
    %vm111 = vcmp.eq.f32.partialorder %v110, 8.507059e+37
    %v112 = vand.u32 %v100, 2147483648
    %v113 = vor.u32 1.1754944e-38, %v112
    %v114 = vsel %vm111, %v113, %v109
    %v115 = vmul.f32 %v90, %v114
    %v116 = vmin.f32 %v115, 1.0
    %v117 = vmax.f32 %v116, -1.0
    %v118 = vmul.f32 %v77, %v77
    %v119 = vmin.f32 16.0, %v118
    %v120 = vmul.f32 %v119, 2.1237322e-06
    %v121 = vadd.f32 %v120, 0.00028619796
    %v122 = vmul.f32 %v119, %v121
    %v123 = vadd.f32 %v122, 0.0036580483
    %v124 = vmul.f32 %v119, %v123
    %v125 = vadd.f32 %v124, 0.05243302
    %v126 = vmul.f32 %v119, %v125
    %v127 = vadd.f32 %v126, 0.18741608
    %v128 = vmul.f32 %v119, %v127
    %v129 = vadd.f32 %v128, 1.1283791
    %v130 = vmul.f32 %v77, %v129
    %v131 = vmul.f32 %v119, 3.8918573e-05
    %v132 = vadd.f32 %v131, 0.001143296
    %v133 = vmul.f32 %v119, %v132
    %v134 = vadd.f32 %v133, 0.014752088
    %v135 = vmul.f32 %v119, %v134
    %v136 = vadd.f32 %v135, 0.112945676
    %v137 = vmul.f32 %v119, %v136
    %v138 = vadd.f32 %v137, 0.4994258
    %v139 = vmul.f32 %v119, %v138
    %v140 = vadd.f32 %v139, 1.0
    %v141 = vrcp.pop %v140
    %v142 = vmul.f32 %v140, %v141
    %v143 = vsub.f32 1.0, %v142
    %v144 = vmul.f32 %v141, %v143
    %v145 = vadd.f32 %v141, %v144
    %vm146 = vweird.f32 %v140
    %vm147 = vweird.f32 %v141
    %vm148 = vmor %vm146, %vm147
    %v149 = vsel %vm148, %v141, %v145
    %v150 = vand.u32 2147483647, %v140
    %vm151 = vcmp.eq.f32.partialorder %v150, 8.507059e+37
    %v152 = vand.u32 %v140, 2147483648
    %v153 = vor.u32 1.1754944e-38, %v152
    %v154 = vsel %vm151, %v153, %v149
    %v155 = vmul.f32 %v130, %v154
    %v156 = vmin.f32 %v155, 1.0
    %v157 = vmax.f32 %v156, -1.0
    %v158 = vadd.f32 %v117, 1.0
    %v159 = vadd.f32 %v157, 1.0
    %v160 = vmul.f32 %v74, %v158
    %v161 = vmul.f32 %v75, %v159
    %v162 = vld [vmem:[#allocation2] sm:$0xff]
    %v163 = vld [vmem:[#allocation2 + $0x8] sm:$0xff]
    %v164 = vpack.c.bf16 %v161, %v160
    %v165 = vld [vmem:[%s3] sm:$0xf]
    %v166 = vld [vmem:[%s3 + $0x4] sm:$0xf]
    %v167 = vld [vmem:[%s3 + $0x8] sm:$0xf]
    %v168 = vld [vmem:[%s3 + $0xc] sm:$0xf]
    %v169 = vld [vmem:[%s3 + $0x10] sm:$0xf]
    %v170 = vld [vmem:[%s3 + $0x14] sm:$0xf]
    %v171 = vld [vmem:[%s3 + $0x18] sm:$0xf]
    %v172 = vld [vmem:[%s3 + $0x1c] sm:$0xf]
    %v173 = vld [vmem:[%s3 + $0x20] sm:$0xf]
    %v174 = vld [vmem:[%s3 + $0x24] sm:$0xf]
    %v175 = vld [vmem:[%s3 + $0x28] sm:$0xf]
    %v176 = vld [vmem:[%s3 + $0x2c] sm:$0xf]
    %v177 = vld [vmem:[%s3 + $0x30] sm:$0xf]
    %v178 = vld [vmem:[%s3 + $0x34] sm:$0xf]
    %v179 = vld [vmem:[%s3 + $0x38] sm:$0xf]
    %v180 = vld [vmem:[%s3 + $0x3c] sm:$0xf]
    %v197 = vunpack.c.l.b16 %v165
    %v198 = vunpack.c.l.b16 %v166
    %v199 = vunpack.c.l.b16 %v167
    %v200 = vunpack.c.l.b16 %v168
    %v201 = vunpack.c.l.b16 %v169
    %v202 = vunpack.c.l.b16 %v170
    %v203 = vunpack.c.l.b16 %v171
    %v204 = vunpack.c.l.b16 %v172
    %v205 = vunpack.c.l.b16 %v173
    %v206 = vunpack.c.l.b16 %v174
    %v207 = vunpack.c.l.b16 %v175
    %v208 = vunpack.c.l.b16 %v176
    %v209 = vunpack.c.l.b16 %v177
    %v210 = vunpack.c.l.b16 %v178
    %v211 = vunpack.c.l.b16 %v179
    %v212 = vunpack.c.l.b16 %v180
    %v213 = vpack.c.b16 %v198, %v197
    %v214 = vpack.c.b16 %v200, %v199
    %v215 = vpack.c.b16 %v202, %v201
    %v216 = vpack.c.b16 %v204, %v203
    %v217 = vpack.c.b16 %v206, %v205
    %v218 = vpack.c.b16 %v208, %v207
    %v219 = vpack.c.b16 %v210, %v209
    %v220 = vpack.c.b16 %v212, %v211
    %229 = vmatpush.bf16.msra.mxu0 %v220
    %230 = vmatpush.bf16.msra.mxu0 %v219
    %231 = vmatpush.bf16.msra.mxu0 %v218
    %232 = vmatpush.bf16.msra.mxu0 %v217
    %233 = vmatpush.bf16.msra.mxu0 %v216
    %234 = vmatpush.bf16.msra.mxu0 %v215
    %235 = vmatpush.bf16.msra.mxu0 %v214
    %236 = vmatpush.bf16.msra.mxu0 %v213
    %237 = vmatmul.bf16.gmra.mxu0 %v164
    %v238 = vpop.f32.mrf.mxu0
    %v239 = vadd.f32 0.0, %v238
    %v240 = vpop.f32.mrf.mxu0
    %v241 = vadd.f32 0.0, %v240
    %242 = vdwg.mxu0
    %v243 = vadd.f32 %v162, %v239
    %v244 = vadd.f32 %v163, %v241
    %245 = vst.msk [vmem:[#allocation2] sm:$0xff] %vm56, %v243
    %246 = vst.msk [vmem:[#allocation2 + $0x8] sm:$0xff] %vm56, %v244
    // Predicated region
    $region26: #{mlp_pallas.1} parent=1 // pred_check
      %p247 = pneg %p22
    $region27: #{mlp_pallas.1} parent=1 // pred_check_branch
      %249 = sbr.rel (%p247) target = $region29
    $region28: #{mlp_pallas.1} parent=1 // pred_region
      %v250 = vld [vmem:[#allocation2] sm:$0xff]
      %v251 = vld [vmem:[#allocation2 + $0x8] sm:$0xff]
      %v252 = vld [vmem:[%s4] sm:$0x1]
      %v254 = vperm.slane %v252, 0
      %v256 = vadd.f32 %v250, %v254
      %v257 = vadd.f32 %v251, %v254
      %258 = vst.msk [vmem:[#allocation2] sm:$0xff] %vm56, %v256
      %259 = vst.msk [vmem:[#allocation2 + $0x8] sm:$0xff] %vm56, %v257
    $region29: #{mlp_pallas.1} parent=1 // pred_fallthru
      _
    // Predicated region
    $region30: #{mlp_pallas.1} parent=1 // pred_check
      _
    $region31: #{mlp_pallas.1} parent=1 // pred_check_branch
      %261 = sbr.rel (0) target = $region33
    $region32: #{mlp_pallas.1} parent=1 // pred_region
      %263 = vsyncadd [#allocation3], 0
      %s264 = sshll.u32 [#allocation2], 4
      %s265 = int_to_ptr.vmem [resolvable:$true] %s264
      %s266 = sshll.u32 %s5, 4
      %s267 = int_to_ptr.hbm [resolvable:$true] %s266
      %272 = dma.vmem_to_hbm [thread:$0]  %s265, 256, %s267, [#allocation3], 128, 128, 8
    $region33: #{mlp_pallas.1} parent=1 // pred_fallthru
      _
    // Predicated region
    $region34: #{mlp_pallas.1} parent=1 // pred_check
      _
    $region35: #{mlp_pallas.1} parent=1 // pred_check_branch
      %274 = sbr.rel (0) target = $region37
    $region36: #{mlp_pallas.1} parent=1 // pred_region
      %276 = dma.done [#allocation3], 256
    $region37: #{mlp_pallas.1} parent=1 // pred_fallthru
      _
    %277 = vsyncpa [#allocation3], 1

</llo_original>
